<compile_context>
chip_gen: v6e
topology: v6e:2x2x1
jax: 0.10.0
libtpu: 0.0.40
codegen_flags: <defaults>
</compile_context>

<pallas_src>
import jax
import jax.numpy as jnp
from jax.experimental import pallas as pl
from jax.experimental.pallas import tpu as pltpu

LANE = 128     # TPU lane width; output / N dim padded to this for unmasked stores.
SUBLANE = 8    # f32 sublane; K dim padded to a multiple of this.


def _round_up(n, m):
    return ((n + m - 1) // m) * m


def mlp_kernel(x_ref, w_ref, b_ref, o_ref):
    """Pre-composed fc1·fc2·fc3: one matmul + one bias add, all in VMEM.

    x_ref : (B, Kpad)     f32  (input, K zero-padded to a multiple of 8)
    w_ref : (Kpad, Npad)  f32  composed weight, zero-padded; Npad = 128
    b_ref : (1, Npad)     f32  composed bias, zero-padded
    o_ref : (B, Npad)     f32  lane-dense output (valid cols = num_classes)
    """
    o_ref[...] = (
        jnp.dot(x_ref[...], w_ref[...], preferred_element_type=jnp.float32)
        + b_ref[...]
    ).astype(o_ref.dtype)


def pack_params(params, input_size, hidden_size, num_classes):
    """One-time offline composition + padding of fc1/fc2/fc3.

    Exact up to f32 rounding: with no activation between layers,
        ((x@W1 + b1)@W2 + b2)@W3 + b3  ==  x @ (W1@W2@W3) + (b1@W2@W3 + b2@W3 + b3)
    """
    w1, b1 = params["w1"], params["b1"]   # (in, 2h), (1, 2h)
    w2, b2 = params["w2"], params["b2"]   # (2h, h),  (1, h)
    w3, b3 = params["w3"], params["b3"]   # (h, nc),  (1, nc)

    w_eff = w1 @ w2 @ w3                                   # (in, nc)
    b_eff = b1 @ w2 @ w3 + b2 @ w3 + b3                    # (1, nc)

    kpad = _round_up(input_size, SUBLANE)
    npad = _round_up(max(num_classes, LANE), LANE)

    w_pad = jnp.zeros((kpad, npad), jnp.float32).at[:input_size, :num_classes].set(w_eff)
    b_pad = jnp.zeros((1, npad), jnp.float32).at[:, :num_classes].set(b_eff)

    return {
        "w": w_pad,                 # (kpad, npad)
        "b": b_pad,                 # (1, npad)
        "num_classes": num_classes,
        "input_size": input_size,
        "kpad": kpad,
    }


def net_forward(x, packed):
    """Fused (pre-composed) fc1->fc2->fc3 forward pass in one Pallas kernel.

    x: (B, input_size) float32
    packed: output of pack_params()
    Returns (B, num_classes) float32, matching the PyTorch forward().
    """
    w_pad, b_pad = packed["w"], packed["b"]
    num_classes = packed["num_classes"]
    input_size = packed["input_size"]
    kpad = packed["kpad"]
    B = x.shape[0]
    npad = w_pad.shape[-1]
    itemsize = 4  # f32

    # Zero-pad x's K dim if input_size isn't sublane-aligned (no-op when it is).
    if kpad != input_size:
        x = jnp.pad(x, ((0, 0), (0, kpad - input_size)))

    # Real post-collapse cost (advisory, keeps XLA scheduling honest).
    flops = 2 * B * kpad * npad + B * npad
    bytes_accessed = (
        B * kpad * itemsize          # x
        + w_pad.size * itemsize      # composed weight
        + b_pad.size * itemsize      # composed bias
        + B * npad * itemsize        # output slab
    )

    vmem = pl.BlockSpec(memory_space=pltpu.MemorySpace.VMEM)
    out_padded = pl.pallas_call(
        mlp_kernel,
        out_shape=jax.ShapeDtypeStruct((B, npad), jnp.float32),
        in_specs=[vmem, vmem, vmem],
        out_specs=vmem,
        cost_estimate=pl.CostEstimate(
            flops=flops, transcendentals=0, bytes_accessed=bytes_accessed),
    )(x, w_pad, b_pad)
    # Logical width only at the boundary; under jit this slice fuses into the
    # consumer (or is paid once at the host boundary).
    return out_padded[:, :num_classes]


def init_params(key, input_size, hidden_size, num_classes):
    """Deterministic synthetic parameter init (PyTorch-Linear-like uniform)."""
    def linear(key, fan_in, fan_out):
        kw, kb = jax.random.split(key)
        bound = 1.0 / jnp.sqrt(jnp.float32(fan_in))
        # stored as (in, out) so the math is x @ W
        w = jax.random.uniform(kw, (fan_in, fan_out), jnp.float32, -bound, bound)
        b = jax.random.uniform(kb, (1, fan_out), jnp.float32, -bound, bound)
        return w, b

    k1, k2, k3, k4 = jax.random.split(key, 4)
    w1, b1 = linear(k1, input_size, hidden_size * 2)       # fc1
    w2, b2 = linear(k2, hidden_size * 2, hidden_size)      # fc2
    w3, b3 = linear(k3, hidden_size, num_classes)          # fc3
    # fc4 / ReLU / Softmax exist in __init__ but are unused in forward();
    # fc4 is initialized for parity but never enters the kernel.
    w4, b4 = linear(k4, hidden_size, hidden_size)           # fc4 (unused)
    return {"w1": w1, "b1": b1, "w2": w2, "b2": b2,
            "w3": w3, "b3": b3, "w4": w4, "b4": b4}


if __name__ == "__main__":
    input_size, hidden_size, num_classes = 32, 32, 10
    batch = 8

    key = jax.random.PRNGKey(0)
    kx, kp = jax.random.split(key)
    x = jax.random.normal(kx, (batch, input_size), jnp.float32)
    params = init_params(kp, input_size, hidden_size, num_classes)
    packed = pack_params(params, input_size, hidden_size, num_classes)

    out = net_forward(x, packed)
    out = jax.block_until_ready(out)

    # Reference 1: layer-by-layer (same math as the PyTorch forward). The
    # pre-composed kernel differs only by f32 rounding -> slightly looser tol.
    ref_layered = x @ params["w1"] + params["b1"]
    ref_layered = ref_layered @ params["w2"] + params["b2"]
    ref_layered = ref_layered @ params["w3"] + params["b3"]
    # Reference 2: composed affine map (what the kernel computes, bit-for-bit
    # up to matmul accumulation order).
    w_eff = params["w1"] @ params["w2"] @ params["w3"]
    b_eff = params["b1"] @ params["w2"] @ params["w3"] + params["b2"] @ params["w3"] + params["b3"]
    ref_composed = x @ w_eff + b_eff

    assert out.shape == (batch, num_classes)
    assert jnp.allclose(out, ref_composed, atol=1e-5, rtol=1e-5)
    assert jnp.allclose(out, ref_layered, atol=1e-4, rtol=1e-4)

    print("KERNEL_OK")
</pallas_src>

<mosaic_0001>
module attributes {stable_mosaic.version = 11 : i64} {
  func.func @mlp_kernel(%arg0: memref<8x32xf32, #tpu.memory_space<vmem>>, %arg1: memref<32x128xf32, #tpu.memory_space<vmem>>, %arg2: memref<1x128xf32, #tpu.memory_space<vmem>>, %arg3: memref<8x128xf32, #tpu.memory_space<vmem>>) attributes {dimension_semantics = [], scalar_prefetch = 0 : i64, scratch_operands = 0 : i64, tpu.core_type = #tpu.core_type<tc>} {
    %c0 = arith.constant 0 : index
    %c0_0 = arith.constant 0 : index
    %0 = vector.load %arg0[%c0, %c0_0] : memref<8x32xf32, #tpu.memory_space<vmem>>, vector<8x32xf32>
    %c0_1 = arith.constant 0 : index
    %c0_2 = arith.constant 0 : index
    %1 = vector.load %arg1[%c0_1, %c0_2] : memref<32x128xf32, #tpu.memory_space<vmem>>, vector<32x128xf32>
    %cst = arith.constant dense<0.000000e+00> : vector<8x128xf32>
    %2 = tpu.matmul %0, %1, %cst {dimension_numbers = #tpu.dot_dimension_numbers<[1], [0], [0], [1], [0, 0, 1, 1], [], []>} : vector<8x32xf32>, vector<32x128xf32>, vector<8x128xf32> -> vector<8x128xf32>
    %c0_3 = arith.constant 0 : index
    %c0_4 = arith.constant 0 : index
    %3 = vector.load %arg2[%c0_3, %c0_4] : memref<1x128xf32, #tpu.memory_space<vmem>>, vector<1x128xf32>
    %4 = vector.broadcast %3 : vector<1x128xf32> to vector<8x128xf32>
    %5 = arith.addf %2, %4 : vector<8x128xf32>
    %c0_5 = arith.constant 0 : index
    %c0_6 = arith.constant 0 : index
    %6 = vector.load %arg3[%c0_5, %c0_6] : memref<8x128xf32, #tpu.memory_space<vmem>>, vector<8x128xf32>
    tpu.vector_store %arg3[%c0_5, %c0_6], %5 {strides = array<i32>} : memref<8x128xf32, #tpu.memory_space<vmem>>, vector<8x128xf32>,
    return
  }
}

</mosaic_0001>

<llo_original>
// kernel: tpu_custom_call.1
$region0: #{tpu_custom_call.1}
  #allocation0 [shape = 'u32[]', space=smem, size = 0x4, offset = 0x4, fixed_abs, tag = 'smem constant byte address 0x4 - core index']
  #allocation1 [shape = 'u32[144,128]{1,0:T(1,128)}', space=vmem, size = 0x12000, scoped, tag = 'internal scratch']
  %s0 = inlined_call_operand.hbm [shape: f32[8,32], index: 0, kind: input, shape index: {}]
  %s1 = inlined_call_operand.hbm [shape: f32[32,128], index: 1, kind: input, shape index: {}]
  %s2 = inlined_call_operand.vmem [shape: f32[1,128], index: 2, kind: input, shape index: {}]
  %s3 = inlined_call_operand.hbm [shape: f32[8,128], index: 3, kind: output, shape index: {}]
  %s4 = sld [smem:[#allocation0]]
  $region30: #{tpu_custom_call.1} parent=0
    _
  %s6 = ssub.s32 1, %s4
  %s7 = scalar_select 0, %s6, %s4
  $region1: #{tpu_custom_call.1} parent=0
    #allocation2 [shape = 'u8[4096]{0}', space=vmem, size = 0x1000, scoped, tag = 'input window, operand 0, single buffered']
    #allocation3 [shape = 's32[1]{0}', space=sflag, size = 0x4, scoped, tag = 'scoped memory for tpu_custom_call.1']
    #allocation4 [shape = 's32[1]{0}', space=sflag, size = 0x4, scoped, tag = 'scoped memory for tpu_custom_call.1']
    #allocation5 [shape = 'u8[16384]{0}', space=vmem, size = 0x4000, scoped, tag = 'input window, operand 1, single buffered']
    #allocation6 [shape = 's32[1]{0}', space=sflag, size = 0x4, scoped, tag = 'scoped memory for tpu_custom_call.1']
    #allocation7 [shape = 'u8[4096]{0}', space=vmem, size = 0x1000, scoped, tag = 'output window, operand 0, single buffered']
    %8 = vsyncpa [#allocation3], 0
    %9 = vsyncpa [#allocation6], 0
    %10 = vsyncpa [#allocation4], 0
    // Predicated region
    $region2: #{tpu_custom_call.1} parent=1 // pred_check
      _
    $region3: #{tpu_custom_call.1} parent=1 // pred_check_branch
      %12 = sbr.rel (0) target = $region5
    $region4: #{tpu_custom_call.1} parent=1 // pred_region
      %s14 = ssub.s32 128, 128
      %15 = vsyncadd [#allocation3], %s14
      %s17 = sshll.u32 [#allocation2], 4
      %s18 = int_to_ptr.vmem [resolvable:$true] %s17
      %20 = dma.hbm_to_vmem [thread:$0]  %s0, 128, %s18, [#allocation3]
    $region5: #{tpu_custom_call.1} parent=1 // pred_fallthru
      _
    // Predicated region
    $region6: #{tpu_custom_call.1} parent=1 // pred_check
      _
    $region7: #{tpu_custom_call.1} parent=1 // pred_check_branch
      %22 = sbr.rel (0) target = $region9
    $region8: #{tpu_custom_call.1} parent=1 // pred_region
      %s24 = ssub.s32 512, 512
      %25 = vsyncadd [#allocation6], %s24
      %s26 = sshll.u32 [#allocation5], 4
      %s27 = int_to_ptr.vmem [resolvable:$true] %s26
      %32 = dma.hbm_to_vmem [thread:$0]  %s1, 512, %s27, [#allocation6], 128, 128, 8
    $region9: #{tpu_custom_call.1} parent=1 // pred_fallthru
      _
    // Predicated region
    $region10: #{tpu_custom_call.1} parent=1 // pred_check
      _
    $region11: #{tpu_custom_call.1} parent=1 // pred_check_branch
      %34 = sbr.rel (0) target = $region13
    $region12: #{tpu_custom_call.1} parent=1 // pred_region
      _
    $region13: #{tpu_custom_call.1} parent=1 // pred_fallthru
      _
    // Predicated region
    $region14: #{tpu_custom_call.1} parent=1 // pred_check
      _
    $region15: #{tpu_custom_call.1} parent=1 // pred_check_branch
      %36 = sbr.rel (0) target = $region17
    $region16: #{tpu_custom_call.1} parent=1 // pred_region
      %37 = dma.done [#allocation3], 128
    $region17: #{tpu_custom_call.1} parent=1 // pred_fallthru
      _
    // Predicated region
    $region18: #{tpu_custom_call.1} parent=1 // pred_check
      _
    $region19: #{tpu_custom_call.1} parent=1 // pred_check_branch
      %39 = sbr.rel (0) target = $region21
    $region20: #{tpu_custom_call.1} parent=1 // pred_region
      %40 = dma.done [#allocation6], 512
    $region21: #{tpu_custom_call.1} parent=1 // pred_fallthru
      _
    %v41 = vld [vmem:[#allocation2] sm:$0xff]
    %v42 = vld [vmem:[#allocation5] sm:$0xff]
    %v43 = vld [vmem:[#allocation5 + $0x8] sm:$0xff]
    %v44 = vld [vmem:[#allocation5 + $0x10] sm:$0xff]
    %v45 = vld [vmem:[#allocation5 + $0x18] sm:$0xff]
    %v46 = vld [vmem:[%s2] sm:$0x1]
    %v48 = vlaneseq
    %v49 = vshrl.u32 %v48, 7
    %v50 = vsub.s32 0, %v49
    %v51 = vrot.slane %v46, %v50
    %vm53 = vcmask 261120
    %v55 = vsel %vm53, %v41, 0
    %57 = vmatprep.subr.mxu0 0.0
    %58 = vmatpush1.msra.mxu0 0.0
    %59 = vmatprep.subr.mxu0 0.0
    %60 = vmatpush1.msra.mxu0 0.0
    %61 = vmatprep.subr.mxu0 0.0
    %62 = vmatpush1.msra.mxu0 0.0
    %63 = vmatprep.subr.mxu0 0.0
    %64 = vmatpush1.msra.mxu0 0.0
    %65 = vmatprep.subr.mxu0 0.0
    %66 = vmatpush1.msra.mxu0 0.0
    %67 = vmatprep.subr.mxu0 0.0
    %68 = vmatpush1.msra.mxu0 0.0
    %69 = vmatprep.subr.mxu0 0.0
    %70 = vmatpush1.msra.mxu0 0.0
    %71 = vmatprep.subr.mxu0 0.0
    %72 = vmatpush1.msra.mxu0 0.0
    %73 = vmatprep.subr.mxu0 0.0
    %74 = vmatpush1.msra.mxu0 0.0
    %75 = vmatprep.subr.mxu0 0.0
    %76 = vmatpush1.msra.mxu0 0.0
    %77 = vmatprep.subr.mxu0 0.0
    %78 = vmatpush1.msra.mxu0 0.0
    %79 = vmatprep.subr.mxu0 0.0
    %80 = vmatpush1.msra.mxu0 0.0
    %81 = vmatprep.subr.mxu0 0.0
    %82 = vmatpush1.msra.mxu0 %v45
    %83 = vmatprep.subr.mxu0 0.0
    %84 = vmatpush1.msra.mxu0 %v44
    %85 = vmatprep.subr.mxu0 0.0
    %86 = vmatpush1.msra.mxu0 %v43
    %87 = vmatprep.subr.mxu0 0.0
    %88 = vmatpush1.msra.mxu0 %v42
    %89 = vmatprep.subr.mxu0 0.0
    %90 = vmatpush2.msra.mxu0 0.0
    %91 = vmatprep.subr.mxu0 0.0
    %92 = vmatpush2.msra.mxu0 0.0
    %93 = vmatprep.subr.mxu0 0.0
    %94 = vmatpush2.msra.mxu0 0.0
    %95 = vmatprep.subr.mxu0 0.0
    %96 = vmatpush2.msra.mxu0 0.0
    %97 = vmatprep.subr.mxu0 0.0
    %98 = vmatpush2.msra.mxu0 0.0
    %99 = vmatprep.subr.mxu0 0.0
    %100 = vmatpush2.msra.mxu0 0.0
    %101 = vmatprep.subr.mxu0 0.0
    %102 = vmatpush2.msra.mxu0 0.0
    %103 = vmatprep.subr.mxu0 0.0
    %104 = vmatpush2.msra.mxu0 0.0
    %105 = vmatprep.subr.mxu0 0.0
    %106 = vmatpush2.msra.mxu0 0.0
    %107 = vmatprep.subr.mxu0 0.0
    %108 = vmatpush2.msra.mxu0 0.0
    %109 = vmatprep.subr.mxu0 0.0
    %110 = vmatpush2.msra.mxu0 0.0
    %111 = vmatprep.subr.mxu0 0.0
    %112 = vmatpush2.msra.mxu0 0.0
    %113 = vmatprep.subr.mxu0 0.0
    %114 = vmatpush2.msra.mxu0 0.0
    %115 = vmatprep.subr.mxu0 0.0
    %116 = vmatpush2.msra.mxu0 0.0
    %117 = vmatprep.subr.mxu0 0.0
    %118 = vmatpush2.msra.mxu0 0.0
    %119 = vmatprep.subr.mxu0 0.0
    %120 = vmatpush2.msra.mxu0 0.0
    %121 = vmatprep.mubr.f32.mxu0 0.0
    %122 = vmatmul.mubr.f32.gmra.mxu0 %v55
    %v123 = vpop.f32.mrf.mxu0
    %v124 = vadd.f32 %v51, %v123
    %v125 = vpop.f32.mrf.mxu0
    %126 = vdwg.mxu0
    %127 = vst [vmem:[#allocation7] sm:$0xff] %v124
    // Predicated region
    $region22: #{tpu_custom_call.1} parent=1 // pred_check
      _
    $region23: #{tpu_custom_call.1} parent=1 // pred_check_branch
      %129 = sbr.rel (0) target = $region25
    $region24: #{tpu_custom_call.1} parent=1 // pred_region
      %s131 = ssub.s32 128, 128
      %132 = vsyncadd [#allocation4], %s131
      %s134 = sshll.u32 [#allocation7], 4
      %s135 = int_to_ptr.vmem [resolvable:$true] %s134
      %137 = dma.vmem_to_hbm [thread:$0]  %s135, 128, %s3, [#allocation4]
    $region25: #{tpu_custom_call.1} parent=1 // pred_fallthru
      _
    // Predicated region
    $region26: #{tpu_custom_call.1} parent=1 // pred_check
      _
    $region27: #{tpu_custom_call.1} parent=1 // pred_check_branch
      %139 = sbr.rel (0) target = $region29
    $region28: #{tpu_custom_call.1} parent=1 // pred_region
      %140 = dma.done [#allocation4], 128
    $region29: #{tpu_custom_call.1} parent=1 // pred_fallthru
      _
    %141 = vsyncpa [#allocation3], 1
    %142 = vsyncpa [#allocation6], 1
    %143 = vsyncpa [#allocation4], 1

</llo_original>
